<compile_context>
chip_gen: v6e
topology: v6e:2x2x1
jax: 0.10.0
libtpu: 0.0.40
codegen_flags: <defaults>
</compile_context>

<pallas_src>
import math
import numpy as np
import jax
import jax.numpy as jnp
from jax.experimental import pallas as pl
from jax.experimental.pallas import tpu as pltpu

# ---- KAN_GPT / KANLinear hyper-parameters (module defaults) ----
GRID_SIZE = 3                          # KAN_GPT(grid=3)
SPLINE_ORDER = 3                       # KAN_GPT passes spline_order=grid (=3)
NUM_COEF = GRID_SIZE + SPLINE_ORDER    # 6 b-spline bases per input feature
NUM_FEATS = 1 + NUM_COEF               # silu(x) + 6 bases
GRID_RANGE = (-1.0, 1.0)
BN_EPS = 1e-5
SQRT_2_OVER_PI = math.sqrt(2.0 / math.pi)
LANE = 128                             # pad the fused contraction dim to a multiple of this
SUB = 8                                # rows per in-kernel sub-block (bounds spline live set)


def _make_grid_vals():
    h = (GRID_RANGE[1] - GRID_RANGE[0]) / GRID_SIZE
    return [GRID_RANGE[0] + h * i
            for i in range(-SPLINE_ORDER, GRID_SIZE + SPLINE_ORDER + 1)]


GRID_VALS = _make_grid_vals()          # length 10, python floats (baked as constants)


def _round_up(n, m):
    return ((n + m - 1) // m) * m


# ------------------------- math helpers (usable in-kernel) -------------------------
def _silu(x):
    return x * jax.nn.sigmoid(x)


def _new_gelu(x):
    return 0.5 * x * (1.0 + jnp.tanh(SQRT_2_OVER_PI * (x + 0.044715 * x * x * x)))


def _bspline_bases(x):
    """Cox-de Boor recursion on the fixed uniform grid (strength-reduced).

    x: (rows, F) f32 -> list of NUM_COEF arrays (rows, F).
    Matches KANLinear.b_splines.  d[j] = x - g[j] is computed once per knot and reused:
      term = cl*d[j]*b[j] - cr*d[j+k+1]*b[j+1],  cl/cr baked Python constants.
    On the uniform default grid cl == cr so the constant is factored out (4 ops per term).
    """
    g = GRID_VALS
    G = len(g)
    d = [x - g[j] for j in range(G)]
    ge = [d[j] >= 0.0 for j in range(G)]                       # x >= g[j]
    bases = [jnp.logical_and(ge[j], jnp.logical_not(ge[j + 1])).astype(x.dtype)
             for j in range(G - 1)]
    for k in range(1, SPLINE_ORDER + 1):
        nxt = []
        for j in range(G - 1 - k):
            cl = 1.0 / (g[j + k] - g[j])
            cr = 1.0 / (g[j + k + 1] - g[j + 1])
            if abs(cl - cr) <= 1e-6 * abs(cl):                 # uniform grid: common factor
                t = cl * (d[j] * bases[j] - d[j + k + 1] * bases[j + 1])
            else:
                t = (cl * d[j]) * bases[j] - (cr * d[j + k + 1]) * bases[j + 1]
            nxt.append(t)
        bases = nxt
    return bases


def _kan_features(x, k_pad, dtype):
    """concat([silu(x), B0(x)..B5(x)], lane axis), zero-padded to k_pad, cast to MXU dtype."""
    parts = [_silu(x)] + _bspline_bases(x)
    feats = jnp.concatenate(parts, axis=-1)                    # (rows, 7*F) f32
    pad = k_pad - feats.shape[-1]
    if pad:
        feats = jnp.concatenate(
            [feats, jnp.zeros((feats.shape[0], pad), feats.dtype)], axis=-1)
    return feats.astype(dtype)


# ------------------------------- Pallas kernel -------------------------------
def mlp_block_kernel(x_ref, w1_ref, sb1_ref, w2_ref, sb2_ref, o_ref):
    # Grid-invariant operands: load once per grid step (tiny: ~24 vregs total).
    w1 = w1_ref[...]                       # (K1, hidden) bf16, zero-padded rows
    w2 = w2_ref[...]                       # (K2, dim)    bf16, zero-padded rows
    scale1, shift1 = sb1_ref[0:1, :], sb1_ref[1:2, :]   # f32 BN scale/shift (layer 1)
    scale2, shift2 = sb2_ref[0:1, :], sb2_ref[1:2, :]   # f32 BN scale/shift (layer 2)

    n_sub = x_ref.shape[0] // SUB

    def body(c, carry):
        r0 = pl.multiple_of(c * SUB, SUB)
        x = x_ref[pl.ds(r0, SUB), :].astype(jnp.float32)        # (SUB, dim)

        # --- KAN_GPT #1: KANLinear(dim -> hidden) as one fused MXU matmul + BatchNorm1d ---
        f1 = _kan_features(x, w1.shape[0], w1.dtype)            # (SUB, K1) bf16
        h = jnp.dot(f1, w1, preferred_element_type=jnp.float32) * scale1 + shift1

        # --- NewGELU (Dropout in eval mode == identity) ---
        h = _new_gelu(h)                                        # (SUB, hidden) f32

        # --- KAN_GPT #2: KANLinear(hidden -> dim) + BatchNorm1d ---
        f2 = _kan_features(h, w2.shape[0], w2.dtype)            # (SUB, K2) bf16
        y = jnp.dot(f2, w2, preferred_element_type=jnp.float32) * scale2 + shift2

        o_ref[pl.ds(r0, SUB), :] = y.astype(o_ref.dtype)
        return carry

    jax.lax.fori_loop(0, n_sub, body, 0)


def mlp_block_pallas(x, packed, tm=64):
    """x: (B, C, dim) -> (B, C, dim). `packed` from pack_params()."""
    B, C, dim = x.shape
    N = B * C
    hidden = packed["sb1"].shape[-1]
    K1 = packed["w1"].shape[0]
    K2 = packed["w2"].shape[0]
    assert packed["w2"].shape[1] == dim and packed["w1"].shape[1] == hidden

    # Row tile: multiple of SUB; clamp for small N. (For v7x megacore, large-N inputs get
    # many grid steps at tm=64 so the "parallel" axis can shard across both TensorCores.)
    tm = max(SUB, min(_round_up(tm, SUB), _round_up(N, SUB)))
    n_pad = _round_up(N, tm)

    x2 = x.reshape(N, dim).astype(jnp.float32)
    if n_pad != N:
        x2 = jnp.pad(x2, ((0, n_pad - N), (0, 0)))              # rows only; no lane padding

    cost = pl.CostEstimate(
        flops=2 * n_pad * (K1 * hidden + K2 * dim),
        transcendentals=n_pad * (dim + 2 * hidden),             # silu(x), gelu(h), silu(h)
        bytes_accessed=(n_pad * dim * 4 * 2
                        + packed["w1"].size * 2 + packed["w2"].size * 2
                        + (packed["sb1"].size + packed["sb2"].size) * 4),
    )

    out_p = pl.pallas_call(
        mlp_block_kernel,
        out_shape=jax.ShapeDtypeStruct((n_pad, dim), jnp.float32),
        grid=(n_pad // tm,),
        in_specs=[
            pl.BlockSpec((tm, dim), lambda i: (i, 0)),          # x row tile (real width)
            pl.BlockSpec((K1, hidden), lambda i: (0, 0)),       # fused W1 (bf16)
            pl.BlockSpec((2, hidden), lambda i: (0, 0)),        # BN1 [scale; shift] (f32)
            pl.BlockSpec((K2, dim), lambda i: (0, 0)),          # fused W2 (bf16)
            pl.BlockSpec((2, dim), lambda i: (0, 0)),           # BN2 [scale; shift] (f32)
        ],
        out_specs=pl.BlockSpec((tm, dim), lambda i: (i, 0)),
        compiler_params=pltpu.CompilerParams(
            dimension_semantics=("parallel",),
            vmem_limit_bytes=32 * 1024 * 1024,
        ),
        cost_estimate=cost,
    )(x2, packed["w1"], packed["sb1"], packed["w2"], packed["sb2"])

    out = out_p[:N] if n_pad != N else out_p
    return out.reshape(B, C, dim).astype(x.dtype)


# ------------------------------- parameters -------------------------------
def init_raw_params(key, dim, hidden):
    """Raw (PyTorch-layout) parameters used by the reference."""
    ks = jax.random.split(key, 14)
    w = lambda k, shape, s=0.1: s * jax.random.normal(k, shape, jnp.float32)

    return {
        # KANLinear(dim -> hidden): base_weight (hid, dim), spline_weight (hid, dim, 6),
        # spline_scaler (hid, dim); BatchNorm1d(hidden) gamma/beta/mean/var.
        "base_w1": w(ks[0], (hidden, dim)),
        "spline_w1": w(ks[1], (hidden, dim, NUM_COEF)),
        "spline_sc1": w(ks[2], (hidden, dim), 1.0),
        "bn1": (1.0 + w(ks[3], (hidden,)), w(ks[4], (hidden,)),
                w(ks[5], (hidden,)), jnp.abs(1.0 + w(ks[6], (hidden,)))),
        # KANLinear(hidden -> dim) + BatchNorm1d(dim)
        "base_w2": w(ks[7], (dim, hidden)),
        "spline_w2": w(ks[8], (dim, hidden, NUM_COEF)),
        "spline_sc2": w(ks[9], (dim, hidden), 1.0),
        "bn2": (1.0 + w(ks[10], (dim,)), w(ks[11], (dim,)),
                w(ks[12], (dim,)), jnp.abs(1.0 + w(ks[13], (dim,)))),
    }


def _fold_bn(gamma, beta, mean, var):
    scale = gamma / jnp.sqrt(var + BN_EPS)
    shift = beta - mean * scale
    return scale, shift


def _fuse_layer(base_w, spline_w, spline_sc, bn, k_pad):
    """Fuse base weight + 6 scaled-spline weights into one (k_pad, out) bf16 matrix.

    The BatchNorm scale/shift stay f32 (applied after the matmul in-kernel) so the bf16
    quantization of the weights is independent of the BN dynamic range.
    """
    scale, shift = _fold_bn(*bn)
    scaled_spline = spline_w * spline_sc[..., None]                    # scale_spline = 1.0
    blocks = [base_w.T] + [scaled_spline[:, :, c].T for c in range(NUM_COEF)]
    w = jnp.concatenate(blocks, axis=0)                                # (7*in, out) f32
    w_pad = jnp.zeros((k_pad, w.shape[1]), jnp.float32).at[: w.shape[0], :].set(w)
    sb = jnp.stack([scale, shift], axis=0).astype(jnp.float32)         # (2, out)
    return w_pad.astype(jnp.bfloat16), sb


def pack_params(raw, dim, hidden, lane=LANE):
    k1 = _round_up(NUM_FEATS * dim, lane)        # 7*16 = 112 -> 128
    k2 = _round_up(NUM_FEATS * hidden, lane)     # 7*32 = 224 -> 256
    w1, sb1 = _fuse_layer(raw["base_w1"], raw["spline_w1"], raw["spline_sc1"], raw["bn1"], k1)
    w2, sb2 = _fuse_layer(raw["base_w2"], raw["spline_w2"], raw["spline_sc2"], raw["bn2"], k2)
    return {"w1": w1, "sb1": sb1, "w2": w2, "sb2": sb2}


# ------------------------------- pure-JAX reference -------------------------------
def ref_forward(x, raw):
    B, C, dim = x.shape
    hp = jax.lax.Precision.HIGHEST

    def kan(z, base_w, spline_w, spline_sc, bn):
        scale, shift = _fold_bn(*bn)
        scaled = spline_w * spline_sc[..., None]
        out = jnp.dot(_silu(z), base_w.T, precision=hp)
        bases = _bspline_bases(z)
        for c in range(NUM_COEF):
            out = out + jnp.dot(bases[c], scaled[:, :, c].T, precision=hp)
        return out * scale + shift

    z = x.reshape(-1, dim).astype(jnp.float32)
    h = _new_gelu(kan(z, raw["base_w1"], raw["spline_w1"], raw["spline_sc1"], raw["bn1"]))
    y = kan(h, raw["base_w2"], raw["spline_w2"], raw["spline_sc2"], raw["bn2"])
    return y.reshape(B, C, dim)


# ------------------------------- main -------------------------------
if __name__ == "__main__":
    dim, hidden = 16, 32          # MLP_Block(dim=16, hidden_dim=32)
    B, C = 2, 8                   # forward input (B, C, T=dim)

    key = jax.random.PRNGKey(0)
    kx, kp = jax.random.split(key)
    x = jax.random.normal(kx, (B, C, dim), jnp.float32)

    raw = init_raw_params(kp, dim, hidden)
    packed = pack_params(raw, dim, hidden)

    out = mlp_block_pallas(x, packed, tm=64)
    out = jax.block_until_ready(out)

    ref = ref_forward(x, raw)
    # bf16 MXU weights/features (f32 accumulate, f32 BN) vs f32 HIGHEST reference
    np.testing.assert_allclose(np.asarray(out), np.asarray(ref), rtol=2e-2, atol=2e-2)

    print("KERNEL_OK")
</pallas_src>

<mosaic_0001>
module attributes {stable_mosaic.version = 11 : i64} {
  func.func @mlp_block_kernel(%arg0: i32, %arg1: memref<16x16xf32, #tpu.memory_space<vmem>>, %arg2: memref<128x32xbf16, #tpu.memory_space<vmem>>, %arg3: memref<2x32xf32, #tpu.memory_space<vmem>>, %arg4: memref<256x16xbf16, #tpu.memory_space<vmem>>, %arg5: memref<2x16xf32, #tpu.memory_space<vmem>>, %arg6: memref<16x16xf32, #tpu.memory_space<vmem>>) attributes {dimension_semantics = [#tpu.dimension_semantics<parallel>], iteration_bounds = array<i64: 1>, scalar_prefetch = 0 : i64, scratch_operands = 0 : i64, tpu.core_type = #tpu.core_type<tc>, window_params = [{transform_indices = @transform_0, window_bounds = array<i64: 16, 16>}, {pipeline_mode = #tpu.pipeline_mode<synchronous>, transform_indices = @transform_1, window_bounds = array<i64: 128, 32>}, {pipeline_mode = #tpu.pipeline_mode<synchronous>, transform_indices = @transform_2, window_bounds = array<i64: 2, 32>}, {pipeline_mode = #tpu.pipeline_mode<synchronous>, transform_indices = @transform_3, window_bounds = array<i64: 256, 16>}, {pipeline_mode = #tpu.pipeline_mode<synchronous>, transform_indices = @transform_4, window_bounds = array<i64: 2, 16>}, {transform_indices = @transform_5, window_bounds = array<i64: 16, 16>}]} {
    %c0 = arith.constant 0 : index
    %c0_0 = arith.constant 0 : index
    %0 = vector.load %arg2[%c0, %c0_0] : memref<128x32xbf16, #tpu.memory_space<vmem>>, vector<128x32xbf16>
    %c0_1 = arith.constant 0 : index
    %c0_2 = arith.constant 0 : index
    %1 = vector.load %arg4[%c0_1, %c0_2] : memref<256x16xbf16, #tpu.memory_space<vmem>>, vector<256x16xbf16>
    %c0_3 = arith.constant 0 : index
    %c0_4 = arith.constant 0 : index
    %2 = vector.load %arg3[%c0_3, %c0_4] : memref<2x32xf32, #tpu.memory_space<vmem>>, vector<1x32xf32>
    %c1 = arith.constant 1 : index
    %c0_5 = arith.constant 0 : index
    %3 = vector.load %arg3[%c1, %c0_5] : memref<2x32xf32, #tpu.memory_space<vmem>>, vector<1x32xf32>
    %c0_6 = arith.constant 0 : index
    %c0_7 = arith.constant 0 : index
    %4 = vector.load %arg5[%c0_6, %c0_7] : memref<2x16xf32, #tpu.memory_space<vmem>>, vector<1x16xf32>
    %c1_8 = arith.constant 1 : index
    %c0_9 = arith.constant 0 : index
    %5 = vector.load %arg5[%c1_8, %c0_9] : memref<2x16xf32, #tpu.memory_space<vmem>>, vector<1x16xf32>
    %c0_i32 = arith.constant 0 : i32
    %c2_i32 = arith.constant 2 : i32
    %6 = arith.addi %c0_i32, %c2_i32 : i32
    %c1_i32 = arith.constant 1 : i32
    scf.for %arg7 = %c0_i32 to %6 step %c1_i32  : i32 {
      %c8_i32 = arith.constant 8 : i32
      %7 = arith.muli %arg7, %c8_i32 : i32
      %8 = tpu.assume_multiple %7, 8 : i32
      %9 = arith.index_cast %8 : i32 to index
      %c0_11 = arith.constant 0 : index
      %10 = vector.load %arg1[%9, %c0_11] : memref<16x16xf32, #tpu.memory_space<vmem>>, vector<8x16xf32>
      %11 = arith.negf %10 : vector<8x16xf32>
      %12 = math.exp %11 : vector<8x16xf32>
      %cst = arith.constant 1.000000e+00 : f32
      %13 = vector.broadcast %cst : f32 to vector<8x16xf32>
      %14 = arith.addf %13, %12 : vector<8x16xf32>
      %15 = arith.divf %13, %14 : vector<8x16xf32>
      %16 = arith.mulf %10, %15 : vector<8x16xf32>
      %cst_12 = arith.constant -3.000000e+00 : f32
      %17 = vector.broadcast %cst_12 : f32 to vector<8x16xf32>
      %18 = arith.subf %10, %17 : vector<8x16xf32>
      %cst_13 = arith.constant -2.33333325 : f32
      %19 = vector.broadcast %cst_13 : f32 to vector<8x16xf32>
      %20 = arith.subf %10, %19 : vector<8x16xf32>
      %cst_14 = arith.constant -1.66666663 : f32
      %21 = vector.broadcast %cst_14 : f32 to vector<8x16xf32>
      %22 = arith.subf %10, %21 : vector<8x16xf32>
      %cst_15 = arith.constant -1.000000e+00 : f32
      %23 = vector.broadcast %cst_15 : f32 to vector<8x16xf32>
      %24 = arith.subf %10, %23 : vector<8x16xf32>
      %cst_16 = arith.constant -0.333333343 : f32
      %25 = vector.broadcast %cst_16 : f32 to vector<8x16xf32>
      %26 = arith.subf %10, %25 : vector<8x16xf32>
      %cst_17 = arith.constant 0.333333343 : f32
      %27 = vector.broadcast %cst_17 : f32 to vector<8x16xf32>
      %28 = arith.subf %10, %27 : vector<8x16xf32>
      %cst_18 = arith.constant 1.000000e+00 : f32
      %29 = vector.broadcast %cst_18 : f32 to vector<8x16xf32>
      %30 = arith.subf %10, %29 : vector<8x16xf32>
      %cst_19 = arith.constant 1.66666663 : f32
      %31 = vector.broadcast %cst_19 : f32 to vector<8x16xf32>
      %32 = arith.subf %10, %31 : vector<8x16xf32>
      %cst_20 = arith.constant 2.33333325 : f32
      %33 = vector.broadcast %cst_20 : f32 to vector<8x16xf32>
      %34 = arith.subf %10, %33 : vector<8x16xf32>
      %cst_21 = arith.constant 3.000000e+00 : f32
      %35 = vector.broadcast %cst_21 : f32 to vector<8x16xf32>
      %36 = arith.subf %10, %35 : vector<8x16xf32>
      %cst_22 = arith.constant 0.000000e+00 : f32
      %37 = vector.broadcast %cst_22 : f32 to vector<8x16xf32>
      %38 = arith.cmpf oge, %18, %37 : vector<8x16xf32>
      %cst_23 = arith.constant 0.000000e+00 : f32
      %39 = vector.broadcast %cst_23 : f32 to vector<8x16xf32>
      %40 = arith.cmpf oge, %20, %39 : vector<8x16xf32>
      %cst_24 = arith.constant 0.000000e+00 : f32
      %41 = vector.broadcast %cst_24 : f32 to vector<8x16xf32>
      %42 = arith.cmpf oge, %22, %41 : vector<8x16xf32>
      %cst_25 = arith.constant 0.000000e+00 : f32
      %43 = vector.broadcast %cst_25 : f32 to vector<8x16xf32>
      %44 = arith.cmpf oge, %24, %43 : vector<8x16xf32>
      %cst_26 = arith.constant 0.000000e+00 : f32
      %45 = vector.broadcast %cst_26 : f32 to vector<8x16xf32>
      %46 = arith.cmpf oge, %26, %45 : vector<8x16xf32>
      %cst_27 = arith.constant 0.000000e+00 : f32
      %47 = vector.broadcast %cst_27 : f32 to vector<8x16xf32>
      %48 = arith.cmpf oge, %28, %47 : vector<8x16xf32>
      %cst_28 = arith.constant 0.000000e+00 : f32
      %49 = vector.broadcast %cst_28 : f32 to vector<8x16xf32>
      %50 = arith.cmpf oge, %30, %49 : vector<8x16xf32>
      %cst_29 = arith.constant 0.000000e+00 : f32
      %51 = vector.broadcast %cst_29 : f32 to vector<8x16xf32>
      %52 = arith.cmpf oge, %32, %51 : vector<8x16xf32>
      %cst_30 = arith.constant 0.000000e+00 : f32
      %53 = vector.broadcast %cst_30 : f32 to vector<8x16xf32>
      %54 = arith.cmpf oge, %34, %53 : vector<8x16xf32>
      %cst_31 = arith.constant 0.000000e+00 : f32
      %55 = vector.broadcast %cst_31 : f32 to vector<8x16xf32>
      %56 = arith.cmpf oge, %36, %55 : vector<8x16xf32>
      %cst_32 = arith.constant dense<true> : vector<8x16xi1>
      %57 = arith.xori %40, %cst_32 : vector<8x16xi1>
      %58 = arith.andi %38, %57 : vector<8x16xi1>
      %59 = arith.extui %58 : vector<8x16xi1> to vector<8x16xi32>
      %60 = arith.sitofp %59 : vector<8x16xi32> to vector<8x16xf32>
      %cst_33 = arith.constant dense<true> : vector<8x16xi1>
      %61 = arith.xori %42, %cst_33 : vector<8x16xi1>
      %62 = arith.andi %40, %61 : vector<8x16xi1>
      %63 = arith.extui %62 : vector<8x16xi1> to vector<8x16xi32>
      %64 = arith.sitofp %63 : vector<8x16xi32> to vector<8x16xf32>
      %cst_34 = arith.constant dense<true> : vector<8x16xi1>
      %65 = arith.xori %44, %cst_34 : vector<8x16xi1>
      %66 = arith.andi %42, %65 : vector<8x16xi1>
      %67 = arith.extui %66 : vector<8x16xi1> to vector<8x16xi32>
      %68 = arith.sitofp %67 : vector<8x16xi32> to vector<8x16xf32>
      %cst_35 = arith.constant dense<true> : vector<8x16xi1>
      %69 = arith.xori %46, %cst_35 : vector<8x16xi1>
      %70 = arith.andi %44, %69 : vector<8x16xi1>
      %71 = arith.extui %70 : vector<8x16xi1> to vector<8x16xi32>
      %72 = arith.sitofp %71 : vector<8x16xi32> to vector<8x16xf32>
      %cst_36 = arith.constant dense<true> : vector<8x16xi1>
      %73 = arith.xori %48, %cst_36 : vector<8x16xi1>
      %74 = arith.andi %46, %73 : vector<8x16xi1>
      %75 = arith.extui %74 : vector<8x16xi1> to vector<8x16xi32>
      %76 = arith.sitofp %75 : vector<8x16xi32> to vector<8x16xf32>
      %cst_37 = arith.constant dense<true> : vector<8x16xi1>
      %77 = arith.xori %50, %cst_37 : vector<8x16xi1>
      %78 = arith.andi %48, %77 : vector<8x16xi1>
      %79 = arith.extui %78 : vector<8x16xi1> to vector<8x16xi32>
      %80 = arith.sitofp %79 : vector<8x16xi32> to vector<8x16xf32>
      %cst_38 = arith.constant dense<true> : vector<8x16xi1>
      %81 = arith.xori %52, %cst_38 : vector<8x16xi1>
      %82 = arith.andi %50, %81 : vector<8x16xi1>
      %83 = arith.extui %82 : vector<8x16xi1> to vector<8x16xi32>
      %84 = arith.sitofp %83 : vector<8x16xi32> to vector<8x16xf32>
      %cst_39 = arith.constant dense<true> : vector<8x16xi1>
      %85 = arith.xori %54, %cst_39 : vector<8x16xi1>
      %86 = arith.andi %52, %85 : vector<8x16xi1>
      %87 = arith.extui %86 : vector<8x16xi1> to vector<8x16xi32>
      %88 = arith.sitofp %87 : vector<8x16xi32> to vector<8x16xf32>
      %cst_40 = arith.constant dense<true> : vector<8x16xi1>
      %89 = arith.xori %56, %cst_40 : vector<8x16xi1>
      %90 = arith.andi %54, %89 : vector<8x16xi1>
      %91 = arith.extui %90 : vector<8x16xi1> to vector<8x16xi32>
      %92 = arith.sitofp %91 : vector<8x16xi32> to vector<8x16xf32>
      %93 = arith.mulf %18, %60 : vector<8x16xf32>
      %94 = arith.mulf %22, %64 : vector<8x16xf32>
      %95 = arith.subf %93, %94 : vector<8x16xf32>
      %cst_41 = arith.constant 1.500000e+00 : f32
      %96 = vector.broadcast %cst_41 : f32 to vector<8x16xf32>
      %97 = arith.mulf %96, %95 : vector<8x16xf32>
      %98 = arith.mulf %20, %64 : vector<8x16xf32>
      %99 = arith.mulf %24, %68 : vector<8x16xf32>
      %100 = arith.subf %98, %99 : vector<8x16xf32>
      %cst_42 = arith.constant 1.500000e+00 : f32
      %101 = vector.broadcast %cst_42 : f32 to vector<8x16xf32>
      %102 = arith.mulf %101, %100 : vector<8x16xf32>
      %103 = arith.mulf %22, %68 : vector<8x16xf32>
      %104 = arith.mulf %26, %72 : vector<8x16xf32>
      %105 = arith.subf %103, %104 : vector<8x16xf32>
      %cst_43 = arith.constant 1.500000e+00 : f32
      %106 = vector.broadcast %cst_43 : f32 to vector<8x16xf32>
      %107 = arith.mulf %106, %105 : vector<8x16xf32>
      %108 = arith.mulf %24, %72 : vector<8x16xf32>
      %109 = arith.mulf %28, %76 : vector<8x16xf32>
      %110 = arith.subf %108, %109 : vector<8x16xf32>
      %cst_44 = arith.constant 1.500000e+00 : f32
      %111 = vector.broadcast %cst_44 : f32 to vector<8x16xf32>
      %112 = arith.mulf %111, %110 : vector<8x16xf32>
      %113 = arith.mulf %26, %76 : vector<8x16xf32>
      %114 = arith.mulf %30, %80 : vector<8x16xf32>
      %115 = arith.subf %113, %114 : vector<8x16xf32>
      %cst_45 = arith.constant 1.500000e+00 : f32
      %116 = vector.broadcast %cst_45 : f32 to vector<8x16xf32>
      %117 = arith.mulf %116, %115 : vector<8x16xf32>
      %118 = arith.mulf %28, %80 : vector<8x16xf32>
      %119 = arith.mulf %32, %84 : vector<8x16xf32>
      %120 = arith.subf %118, %119 : vector<8x16xf32>
      %cst_46 = arith.constant 1.500000e+00 : f32
      %121 = vector.broadcast %cst_46 : f32 to vector<8x16xf32>
      %122 = arith.mulf %121, %120 : vector<8x16xf32>
      %123 = arith.mulf %30, %84 : vector<8x16xf32>
      %124 = arith.mulf %34, %88 : vector<8x16xf32>
      %125 = arith.subf %123, %124 : vector<8x16xf32>
      %cst_47 = arith.constant 1.500000e+00 : f32
      %126 = vector.broadcast %cst_47 : f32 to vector<8x16xf32>
      %127 = arith.mulf %126, %125 : vector<8x16xf32>
      %128 = arith.mulf %32, %88 : vector<8x16xf32>
      %129 = arith.mulf %36, %92 : vector<8x16xf32>
      %130 = arith.subf %128, %129 : vector<8x16xf32>
      %cst_48 = arith.constant 1.500000e+00 : f32
      %131 = vector.broadcast %cst_48 : f32 to vector<8x16xf32>
      %132 = arith.mulf %131, %130 : vector<8x16xf32>
      %133 = arith.mulf %18, %97 : vector<8x16xf32>
      %134 = arith.mulf %24, %102 : vector<8x16xf32>
      %135 = arith.subf %133, %134 : vector<8x16xf32>
      %cst_49 = arith.constant 7.500000e-01 : f32
      %136 = vector.broadcast %cst_49 : f32 to vector<8x16xf32>
      %137 = arith.mulf %136, %135 : vector<8x16xf32>
      %138 = arith.mulf %20, %102 : vector<8x16xf32>
      %139 = arith.mulf %26, %107 : vector<8x16xf32>
      %140 = arith.subf %138, %139 : vector<8x16xf32>
      %cst_50 = arith.constant 7.500000e-01 : f32
      %141 = vector.broadcast %cst_50 : f32 to vector<8x16xf32>
      %142 = arith.mulf %141, %140 : vector<8x16xf32>
      %143 = arith.mulf %22, %107 : vector<8x16xf32>
      %144 = arith.mulf %28, %112 : vector<8x16xf32>
      %145 = arith.subf %143, %144 : vector<8x16xf32>
      %cst_51 = arith.constant 7.500000e-01 : f32
      %146 = vector.broadcast %cst_51 : f32 to vector<8x16xf32>
      %147 = arith.mulf %146, %145 : vector<8x16xf32>
      %148 = arith.mulf %24, %112 : vector<8x16xf32>
      %149 = arith.mulf %30, %117 : vector<8x16xf32>
      %150 = arith.subf %148, %149 : vector<8x16xf32>
      %cst_52 = arith.constant 7.500000e-01 : f32
      %151 = vector.broadcast %cst_52 : f32 to vector<8x16xf32>
      %152 = arith.mulf %151, %150 : vector<8x16xf32>
      %153 = arith.mulf %26, %117 : vector<8x16xf32>
      %154 = arith.mulf %32, %122 : vector<8x16xf32>
      %155 = arith.subf %153, %154 : vector<8x16xf32>
      %cst_53 = arith.constant 7.500000e-01 : f32
      %156 = vector.broadcast %cst_53 : f32 to vector<8x16xf32>
      %157 = arith.mulf %156, %155 : vector<8x16xf32>
      %158 = arith.mulf %28, %122 : vector<8x16xf32>
      %159 = arith.mulf %34, %127 : vector<8x16xf32>
      %160 = arith.subf %158, %159 : vector<8x16xf32>
      %cst_54 = arith.constant 7.500000e-01 : f32
      %161 = vector.broadcast %cst_54 : f32 to vector<8x16xf32>
      %162 = arith.mulf %161, %160 : vector<8x16xf32>
      %163 = arith.mulf %30, %127 : vector<8x16xf32>
      %164 = arith.mulf %36, %132 : vector<8x16xf32>
      %165 = arith.subf %163, %164 : vector<8x16xf32>
      %cst_55 = arith.constant 7.500000e-01 : f32
      %166 = vector.broadcast %cst_55 : f32 to vector<8x16xf32>
      %167 = arith.mulf %166, %165 : vector<8x16xf32>
      %168 = arith.mulf %18, %137 : vector<8x16xf32>
      %169 = arith.mulf %26, %142 : vector<8x16xf32>
      %170 = arith.subf %168, %169 : vector<8x16xf32>
      %cst_56 = arith.constant 5.000000e-01 : f32
      %171 = vector.broadcast %cst_56 : f32 to vector<8x16xf32>
      %172 = arith.mulf %171, %170 : vector<8x16xf32>
      %173 = arith.mulf %20, %142 : vector<8x16xf32>
      %174 = arith.mulf %28, %147 : vector<8x16xf32>
      %175 = arith.subf %173, %174 : vector<8x16xf32>
      %cst_57 = arith.constant 5.000000e-01 : f32
      %176 = vector.broadcast %cst_57 : f32 to vector<8x16xf32>
      %177 = arith.mulf %176, %175 : vector<8x16xf32>
      %178 = arith.mulf %22, %147 : vector<8x16xf32>
      %179 = arith.mulf %30, %152 : vector<8x16xf32>
      %180 = arith.subf %178, %179 : vector<8x16xf32>
      %cst_58 = arith.constant 5.000000e-01 : f32
      %181 = vector.broadcast %cst_58 : f32 to vector<8x16xf32>
      %182 = arith.mulf %181, %180 : vector<8x16xf32>
      %183 = arith.mulf %24, %152 : vector<8x16xf32>
      %184 = arith.mulf %32, %157 : vector<8x16xf32>
      %185 = arith.subf %183, %184 : vector<8x16xf32>
      %cst_59 = arith.constant 5.000000e-01 : f32
      %186 = vector.broadcast %cst_59 : f32 to vector<8x16xf32>
      %187 = arith.mulf %186, %185 : vector<8x16xf32>
      %188 = arith.mulf %26, %157 : vector<8x16xf32>
      %189 = arith.mulf %34, %162 : vector<8x16xf32>
      %190 = arith.subf %188, %189 : vector<8x16xf32>
      %cst_60 = arith.constant 5.000000e-01 : f32
      %191 = vector.broadcast %cst_60 : f32 to vector<8x16xf32>
      %192 = arith.mulf %191, %190 : vector<8x16xf32>
      %193 = arith.mulf %28, %162 : vector<8x16xf32>
      %194 = arith.mulf %36, %167 : vector<8x16xf32>
      %195 = arith.subf %193, %194 : vector<8x16xf32>
      %cst_61 = arith.constant 5.000000e-01 : f32
      %196 = vector.broadcast %cst_61 : f32 to vector<8x16xf32>
      %197 = arith.mulf %196, %195 : vector<8x16xf32>
      %198 = tpu.concatenate %16, %172, %177, %182, %187, %192, %197 in 1 : vector<8x16xf32>, vector<8x16xf32>, vector<8x16xf32>, vector<8x16xf32>, vector<8x16xf32>, vector<8x16xf32>, vector<8x16xf32> -> vector<8x112xf32>
      %cst_62 = arith.constant 0.000000e+00 : f32
      %199 = vector.broadcast %cst_62 : f32 to vector<8x16xf32>
      %200 = tpu.concatenate %198, %199 in 1 : vector<8x112xf32>, vector<8x16xf32> -> vector<8x128xf32>
      %201 = arith.truncf %200 : vector<8x128xf32> to vector<8x128xbf16>
      %cst_63 = arith.constant dense<0.000000e+00> : vector<8x32xf32>
      %202 = tpu.matmul %201, %0, %cst_63 {dimension_numbers = #tpu.dot_dimension_numbers<[1], [0], [0], [1], [0, 0, 1, 1], [], []>} : vector<8x128xbf16>, vector<128x32xbf16>, vector<8x32xf32> -> vector<8x32xf32>
      %203 = vector.broadcast %2 : vector<1x32xf32> to vector<8x32xf32>
      %204 = arith.mulf %202, %203 : vector<8x32xf32>
      %205 = vector.broadcast %3 : vector<1x32xf32> to vector<8x32xf32>
      %206 = arith.addf %204, %205 : vector<8x32xf32>
      %cst_64 = arith.constant 5.000000e-01 : f32
      %207 = vector.broadcast %cst_64 : f32 to vector<8x32xf32>
      %208 = arith.mulf %207, %206 : vector<8x32xf32>
      %cst_65 = arith.constant 4.471500e-02 : f32
      %209 = vector.broadcast %cst_65 : f32 to vector<8x32xf32>
      %210 = arith.mulf %209, %206 : vector<8x32xf32>
      %211 = arith.mulf %210, %206 : vector<8x32xf32>
      %212 = arith.mulf %211, %206 : vector<8x32xf32>
      %213 = arith.addf %206, %212 : vector<8x32xf32>
      %cst_66 = arith.constant 0.797884583 : f32
      %214 = vector.broadcast %cst_66 : f32 to vector<8x32xf32>
      %215 = arith.mulf %214, %213 : vector<8x32xf32>
      %216 = math.tanh %215 : vector<8x32xf32>
      %cst_67 = arith.constant 1.000000e+00 : f32
      %217 = vector.broadcast %cst_67 : f32 to vector<8x32xf32>
      %218 = arith.addf %217, %216 : vector<8x32xf32>
      %219 = arith.mulf %208, %218 : vector<8x32xf32>
      %220 = arith.negf %219 : vector<8x32xf32>
      %221 = math.exp %220 : vector<8x32xf32>
      %cst_68 = arith.constant 1.000000e+00 : f32
      %222 = vector.broadcast %cst_68 : f32 to vector<8x32xf32>
      %223 = arith.addf %222, %221 : vector<8x32xf32>
      %224 = arith.divf %222, %223 : vector<8x32xf32>
      %225 = arith.mulf %219, %224 : vector<8x32xf32>
      %cst_69 = arith.constant -3.000000e+00 : f32
      %226 = vector.broadcast %cst_69 : f32 to vector<8x32xf32>
      %227 = arith.subf %219, %226 : vector<8x32xf32>
      %cst_70 = arith.constant -2.33333325 : f32
      %228 = vector.broadcast %cst_70 : f32 to vector<8x32xf32>
      %229 = arith.subf %219, %228 : vector<8x32xf32>
      %cst_71 = arith.constant -1.66666663 : f32
      %230 = vector.broadcast %cst_71 : f32 to vector<8x32xf32>
      %231 = arith.subf %219, %230 : vector<8x32xf32>
      %cst_72 = arith.constant -1.000000e+00 : f32
      %232 = vector.broadcast %cst_72 : f32 to vector<8x32xf32>
      %233 = arith.subf %219, %232 : vector<8x32xf32>
      %cst_73 = arith.constant -0.333333343 : f32
      %234 = vector.broadcast %cst_73 : f32 to vector<8x32xf32>
      %235 = arith.subf %219, %234 : vector<8x32xf32>
      %cst_74 = arith.constant 0.333333343 : f32
      %236 = vector.broadcast %cst_74 : f32 to vector<8x32xf32>
      %237 = arith.subf %219, %236 : vector<8x32xf32>
      %cst_75 = arith.constant 1.000000e+00 : f32
      %238 = vector.broadcast %cst_75 : f32 to vector<8x32xf32>
      %239 = arith.subf %219, %238 : vector<8x32xf32>
      %cst_76 = arith.constant 1.66666663 : f32
      %240 = vector.broadcast %cst_76 : f32 to vector<8x32xf32>
      %241 = arith.subf %219, %240 : vector<8x32xf32>
      %cst_77 = arith.constant 2.33333325 : f32
      %242 = vector.broadcast %cst_77 : f32 to vector<8x32xf32>
      %243 = arith.subf %219, %242 : vector<8x32xf32>
      %cst_78 = arith.constant 3.000000e+00 : f32
      %244 = vector.broadcast %cst_78 : f32 to vector<8x32xf32>
      %245 = arith.subf %219, %244 : vector<8x32xf32>
      %cst_79 = arith.constant 0.000000e+00 : f32
      %246 = vector.broadcast %cst_79 : f32 to vector<8x32xf32>
      %247 = arith.cmpf oge, %227, %246 : vector<8x32xf32>
      %cst_80 = arith.constant 0.000000e+00 : f32
      %248 = vector.broadcast %cst_80 : f32 to vector<8x32xf32>
      %249 = arith.cmpf oge, %229, %248 : vector<8x32xf32>
      %cst_81 = arith.constant 0.000000e+00 : f32
      %250 = vector.broadcast %cst_81 : f32 to vector<8x32xf32>
      %251 = arith.cmpf oge, %231, %250 : vector<8x32xf32>
      %cst_82 = arith.constant 0.000000e+00 : f32
      %252 = vector.broadcast %cst_82 : f32 to vector<8x32xf32>
      %253 = arith.cmpf oge, %233, %252 : vector<8x32xf32>
      %cst_83 = arith.constant 0.000000e+00 : f32
      %254 = vector.broadcast %cst_83 : f32 to vector<8x32xf32>
      %255 = arith.cmpf oge, %235, %254 : vector<8x32xf32>
      %cst_84 = arith.constant 0.000000e+00 : f32
      %256 = vector.broadcast %cst_84 : f32 to vector<8x32xf32>
      %257 = arith.cmpf oge, %237, %256 : vector<8x32xf32>
      %cst_85 = arith.constant 0.000000e+00 : f32
      %258 = vector.broadcast %cst_85 : f32 to vector<8x32xf32>
      %259 = arith.cmpf oge, %239, %258 : vector<8x32xf32>
      %cst_86 = arith.constant 0.000000e+00 : f32
      %260 = vector.broadcast %cst_86 : f32 to vector<8x32xf32>
      %261 = arith.cmpf oge, %241, %260 : vector<8x32xf32>
      %cst_87 = arith.constant 0.000000e+00 : f32
      %262 = vector.broadcast %cst_87 : f32 to vector<8x32xf32>
      %263 = arith.cmpf oge, %243, %262 : vector<8x32xf32>
      %cst_88 = arith.constant 0.000000e+00 : f32
      %264 = vector.broadcast %cst_88 : f32 to vector<8x32xf32>
      %265 = arith.cmpf oge, %245, %264 : vector<8x32xf32>
      %cst_89 = arith.constant dense<true> : vector<8x32xi1>
      %266 = arith.xori %249, %cst_89 : vector<8x32xi1>
      %267 = arith.andi %247, %266 : vector<8x32xi1>
      %268 = arith.extui %267 : vector<8x32xi1> to vector<8x32xi32>
      %269 = arith.sitofp %268 : vector<8x32xi32> to vector<8x32xf32>
      %cst_90 = arith.constant dense<true> : vector<8x32xi1>
      %270 = arith.xori %251, %cst_90 : vector<8x32xi1>
      %271 = arith.andi %249, %270 : vector<8x32xi1>
      %272 = arith.extui %271 : vector<8x32xi1> to vector<8x32xi32>
      %273 = arith.sitofp %272 : vector<8x32xi32> to vector<8x32xf32>
      %cst_91 = arith.constant dense<true> : vector<8x32xi1>
      %274 = arith.xori %253, %cst_91 : vector<8x32xi1>
      %275 = arith.andi %251, %274 : vector<8x32xi1>
      %276 = arith.extui %275 : vector<8x32xi1> to vector<8x32xi32>
      %277 = arith.sitofp %276 : vector<8x32xi32> to vector<8x32xf32>
      %cst_92 = arith.constant dense<true> : vector<8x32xi1>
      %278 = arith.xori %255, %cst_92 : vector<8x32xi1>
      %279 = arith.andi %253, %278 : vector<8x32xi1>
      %280 = arith.extui %279 : vector<8x32xi1> to vector<8x32xi32>
      %281 = arith.sitofp %280 : vector<8x32xi32> to vector<8x32xf32>
      %cst_93 = arith.constant dense<true> : vector<8x32xi1>
      %282 = arith.xori %257, %cst_93 : vector<8x32xi1>
      %283 = arith.andi %255, %282 : vector<8x32xi1>
      %284 = arith.extui %283 : vector<8x32xi1> to vector<8x32xi32>
      %285 = arith.sitofp %284 : vector<8x32xi32> to vector<8x32xf32>
      %cst_94 = arith.constant dense<true> : vector<8x32xi1>
      %286 = arith.xori %259, %cst_94 : vector<8x32xi1>
      %287 = arith.andi %257, %286 : vector<8x32xi1>
      %288 = arith.extui %287 : vector<8x32xi1> to vector<8x32xi32>
      %289 = arith.sitofp %288 : vector<8x32xi32> to vector<8x32xf32>
      %cst_95 = arith.constant dense<true> : vector<8x32xi1>
      %290 = arith.xori %261, %cst_95 : vector<8x32xi1>
      %291 = arith.andi %259, %290 : vector<8x32xi1>
      %292 = arith.extui %291 : vector<8x32xi1> to vector<8x32xi32>
      %293 = arith.sitofp %292 : vector<8x32xi32> to vector<8x32xf32>
      %cst_96 = arith.constant dense<true> : vector<8x32xi1>
      %294 = arith.xori %263, %cst_96 : vector<8x32xi1>
      %295 = arith.andi %261, %294 : vector<8x32xi1>
      %296 = arith.extui %295 : vector<8x32xi1> to vector<8x32xi32>
      %297 = arith.sitofp %296 : vector<8x32xi32> to vector<8x32xf32>
      %cst_97 = arith.constant dense<true> : vector<8x32xi1>
      %298 = arith.xori %265, %cst_97 : vector<8x32xi1>
      %299 = arith.andi %263, %298 : vector<8x32xi1>
      %300 = arith.extui %299 : vector<8x32xi1> to vector<8x32xi32>
      %301 = arith.sitofp %300 : vector<8x32xi32> to vector<8x32xf32>
      %302 = arith.mulf %227, %269 : vector<8x32xf32>
      %303 = arith.mulf %231, %273 : vector<8x32xf32>
      %304 = arith.subf %302, %303 : vector<8x32xf32>
      %cst_98 = arith.constant 1.500000e+00 : f32
      %305 = vector.broadcast %cst_98 : f32 to vector<8x32xf32>
      %306 = arith.mulf %305, %304 : vector<8x32xf32>
      %307 = arith.mulf %229, %273 : vector<8x32xf32>
      %308 = arith.mulf %233, %277 : vector<8x32xf32>
      %309 = arith.subf %307, %308 : vector<8x32xf32>
      %cst_99 = arith.constant 1.500000e+00 : f32
      %310 = vector.broadcast %cst_99 : f32 to vector<8x32xf32>
      %311 = arith.mulf %310, %309 : vector<8x32xf32>
      %312 = arith.mulf %231, %277 : vector<8x32xf32>
      %313 = arith.mulf %235, %281 : vector<8x32xf32>
      %314 = arith.subf %312, %313 : vector<8x32xf32>
      %cst_100 = arith.constant 1.500000e+00 : f32
      %315 = vector.broadcast %cst_100 : f32 to vector<8x32xf32>
      %316 = arith.mulf %315, %314 : vector<8x32xf32>
      %317 = arith.mulf %233, %281 : vector<8x32xf32>
      %318 = arith.mulf %237, %285 : vector<8x32xf32>
      %319 = arith.subf %317, %318 : vector<8x32xf32>
      %cst_101 = arith.constant 1.500000e+00 : f32
      %320 = vector.broadcast %cst_101 : f32 to vector<8x32xf32>
      %321 = arith.mulf %320, %319 : vector<8x32xf32>
      %322 = arith.mulf %235, %285 : vector<8x32xf32>
      %323 = arith.mulf %239, %289 : vector<8x32xf32>
      %324 = arith.subf %322, %323 : vector<8x32xf32>
      %cst_102 = arith.constant 1.500000e+00 : f32
      %325 = vector.broadcast %cst_102 : f32 to vector<8x32xf32>
      %326 = arith.mulf %325, %324 : vector<8x32xf32>
      %327 = arith.mulf %237, %289 : vector<8x32xf32>
      %328 = arith.mulf %241, %293 : vector<8x32xf32>
      %329 = arith.subf %327, %328 : vector<8x32xf32>
      %cst_103 = arith.constant 1.500000e+00 : f32
      %330 = vector.broadcast %cst_103 : f32 to vector<8x32xf32>
      %331 = arith.mulf %330, %329 : vector<8x32xf32>
      %332 = arith.mulf %239, %293 : vector<8x32xf32>
      %333 = arith.mulf %243, %297 : vector<8x32xf32>
      %334 = arith.subf %332, %333 : vector<8x32xf32>
      %cst_104 = arith.constant 1.500000e+00 : f32
      %335 = vector.broadcast %cst_104 : f32 to vector<8x32xf32>
      %336 = arith.mulf %335, %334 : vector<8x32xf32>
      %337 = arith.mulf %241, %297 : vector<8x32xf32>
      %338 = arith.mulf %245, %301 : vector<8x32xf32>
      %339 = arith.subf %337, %338 : vector<8x32xf32>
      %cst_105 = arith.constant 1.500000e+00 : f32
      %340 = vector.broadcast %cst_105 : f32 to vector<8x32xf32>
      %341 = arith.mulf %340, %339 : vector<8x32xf32>
      %342 = arith.mulf %227, %306 : vector<8x32xf32>
      %343 = arith.mulf %233, %311 : vector<8x32xf32>
      %344 = arith.subf %342, %343 : vector<8x32xf32>
      %cst_106 = arith.constant 7.500000e-01 : f32
      %345 = vector.broadcast %cst_106 : f32 to vector<8x32xf32>
      %346 = arith.mulf %345, %344 : vector<8x32xf32>
      %347 = arith.mulf %229, %311 : vector<8x32xf32>
      %348 = arith.mulf %235, %316 : vector<8x32xf32>
      %349 = arith.subf %347, %348 : vector<8x32xf32>
      %cst_107 = arith.constant 7.500000e-01 : f32
      %350 = vector.broadcast %cst_107 : f32 to vector<8x32xf32>
      %351 = arith.mulf %350, %349 : vector<8x32xf32>
      %352 = arith.mulf %231, %316 : vector<8x32xf32>
      %353 = arith.mulf %237, %321 : vector<8x32xf32>
      %354 = arith.subf %352, %353 : vector<8x32xf32>
      %cst_108 = arith.constant 7.500000e-01 : f32
      %355 = vector.broadcast %cst_108 : f32 to vector<8x32xf32>
      %356 = arith.mulf %355, %354 : vector<8x32xf32>
      %357 = arith.mulf %233, %321 : vector<8x32xf32>
      %358 = arith.mulf %239, %326 : vector<8x32xf32>
      %359 = arith.subf %357, %358 : vector<8x32xf32>
      %cst_109 = arith.constant 7.500000e-01 : f32
      %360 = vector.broadcast %cst_109 : f32 to vector<8x32xf32>
      %361 = arith.mulf %360, %359 : vector<8x32xf32>
      %362 = arith.mulf %235, %326 : vector<8x32xf32>
      %363 = arith.mulf %241, %331 : vector<8x32xf32>
      %364 = arith.subf %362, %363 : vector<8x32xf32>
      %cst_110 = arith.constant 7.500000e-01 : f32
      %365 = vector.broadcast %cst_110 : f32 to vector<8x32xf32>
      %366 = arith.mulf %365, %364 : vector<8x32xf32>
      %367 = arith.mulf %237, %331 : vector<8x32xf32>
      %368 = arith.mulf %243, %336 : vector<8x32xf32>
      %369 = arith.subf %367, %368 : vector<8x32xf32>
      %cst_111 = arith.constant 7.500000e-01 : f32
      %370 = vector.broadcast %cst_111 : f32 to vector<8x32xf32>
      %371 = arith.mulf %370, %369 : vector<8x32xf32>
      %372 = arith.mulf %239, %336 : vector<8x32xf32>
      %373 = arith.mulf %245, %341 : vector<8x32xf32>
      %374 = arith.subf %372, %373 : vector<8x32xf32>
      %cst_112 = arith.constant 7.500000e-01 : f32
      %375 = vector.broadcast %cst_112 : f32 to vector<8x32xf32>
      %376 = arith.mulf %375, %374 : vector<8x32xf32>
      %377 = arith.mulf %227, %346 : vector<8x32xf32>
      %378 = arith.mulf %235, %351 : vector<8x32xf32>
      %379 = arith.subf %377, %378 : vector<8x32xf32>
      %cst_113 = arith.constant 5.000000e-01 : f32
      %380 = vector.broadcast %cst_113 : f32 to vector<8x32xf32>
      %381 = arith.mulf %380, %379 : vector<8x32xf32>
      %382 = arith.mulf %229, %351 : vector<8x32xf32>
      %383 = arith.mulf %237, %356 : vector<8x32xf32>
      %384 = arith.subf %382, %383 : vector<8x32xf32>
      %cst_114 = arith.constant 5.000000e-01 : f32
      %385 = vector.broadcast %cst_114 : f32 to vector<8x32xf32>
      %386 = arith.mulf %385, %384 : vector<8x32xf32>
      %387 = arith.mulf %231, %356 : vector<8x32xf32>
      %388 = arith.mulf %239, %361 : vector<8x32xf32>
      %389 = arith.subf %387, %388 : vector<8x32xf32>
      %cst_115 = arith.constant 5.000000e-01 : f32
      %390 = vector.broadcast %cst_115 : f32 to vector<8x32xf32>
      %391 = arith.mulf %390, %389 : vector<8x32xf32>
      %392 = arith.mulf %233, %361 : vector<8x32xf32>
      %393 = arith.mulf %241, %366 : vector<8x32xf32>
      %394 = arith.subf %392, %393 : vector<8x32xf32>
      %cst_116 = arith.constant 5.000000e-01 : f32
      %395 = vector.broadcast %cst_116 : f32 to vector<8x32xf32>
      %396 = arith.mulf %395, %394 : vector<8x32xf32>
      %397 = arith.mulf %235, %366 : vector<8x32xf32>
      %398 = arith.mulf %243, %371 : vector<8x32xf32>
      %399 = arith.subf %397, %398 : vector<8x32xf32>
      %cst_117 = arith.constant 5.000000e-01 : f32
      %400 = vector.broadcast %cst_117 : f32 to vector<8x32xf32>
      %401 = arith.mulf %400, %399 : vector<8x32xf32>
      %402 = arith.mulf %237, %371 : vector<8x32xf32>
      %403 = arith.mulf %245, %376 : vector<8x32xf32>
      %404 = arith.subf %402, %403 : vector<8x32xf32>
      %cst_118 = arith.constant 5.000000e-01 : f32
      %405 = vector.broadcast %cst_118 : f32 to vector<8x32xf32>
      %406 = arith.mulf %405, %404 : vector<8x32xf32>
      %407 = tpu.concatenate %225, %381, %386, %391, %396, %401, %406 in 1 : vector<8x32xf32>, vector<8x32xf32>, vector<8x32xf32>, vector<8x32xf32>, vector<8x32xf32>, vector<8x32xf32>, vector<8x32xf32> -> vector<8x224xf32>
      %cst_119 = arith.constant 0.000000e+00 : f32
      %408 = vector.broadcast %cst_119 : f32 to vector<8x32xf32>
      %409 = tpu.concatenate %407, %408 in 1 : vector<8x224xf32>, vector<8x32xf32> -> vector<8x256xf32>
      %410 = arith.truncf %409 : vector<8x256xf32> to vector<8x256xbf16>
      %cst_120 = arith.constant dense<0.000000e+00> : vector<8x16xf32>
      %411 = tpu.matmul %410, %1, %cst_120 {dimension_numbers = #tpu.dot_dimension_numbers<[1], [0], [0], [1], [0, 0, 1, 1], [], []>} : vector<8x256xbf16>, vector<256x16xbf16>, vector<8x16xf32> -> vector<8x16xf32>
      %412 = vector.broadcast %4 : vector<1x16xf32> to vector<8x16xf32>
      %413 = arith.mulf %411, %412 : vector<8x16xf32>
      %414 = vector.broadcast %5 : vector<1x16xf32> to vector<8x16xf32>
      %415 = arith.addf %413, %414 : vector<8x16xf32>
      %416 = arith.index_cast %8 : i32 to index
      %c0_121 = arith.constant 0 : index
      %417 = vector.load %arg6[%416, %c0_121] : memref<16x16xf32, #tpu.memory_space<vmem>>, vector<8x16xf32>
      tpu.vector_store %arg6[%416, %c0_121], %415 {strides = array<i32>} : memref<16x16xf32, #tpu.memory_space<vmem>>, vector<8x16xf32>,
    }
    %c2_i32_10 = arith.constant 2 : i32
    return
  }
  func.func @transform_0(%arg0: i32) -> (i32, i32) {
    %c0_i32 = arith.constant 0 : i32
    %c0_i32_0 = arith.constant 0 : i32
    return %arg0, %c0_i32 : i32, i32
  }
  func.func @transform_1(%arg0: i32) -> (i32, i32) {
    %c0_i32 = arith.constant 0 : i32
    %c0_i32_0 = arith.constant 0 : i32
    %c0_i32_1 = arith.constant 0 : i32
    return %c0_i32, %c0_i32_0 : i32, i32
  }
  func.func @transform_2(%arg0: i32) -> (i32, i32) {
    %c0_i32 = arith.constant 0 : i32
    %c0_i32_0 = arith.constant 0 : i32
    %c0_i32_1 = arith.constant 0 : i32
    return %c0_i32, %c0_i32_0 : i32, i32
  }
  func.func @transform_3(%arg0: i32) -> (i32, i32) {
    %c0_i32 = arith.constant 0 : i32
    %c0_i32_0 = arith.constant 0 : i32
    %c0_i32_1 = arith.constant 0 : i32
    return %c0_i32, %c0_i32_0 : i32, i32
  }
  func.func @transform_4(%arg0: i32) -> (i32, i32) {
    %c0_i32 = arith.constant 0 : i32
    %c0_i32_0 = arith.constant 0 : i32
    %c0_i32_1 = arith.constant 0 : i32
    return %c0_i32, %c0_i32_0 : i32, i32
  }
  func.func @transform_5(%arg0: i32) -> (i32, i32) {
    %c0_i32 = arith.constant 0 : i32
    %c0_i32_0 = arith.constant 0 : i32
    return %arg0, %c0_i32 : i32, i32
  }
}

</mosaic_0001>

<llo_original>
// kernel: tpu_custom_call.1
$region0: #{tpu_custom_call.1}
  #allocation0 [shape = 'u32[]', space=smem, size = 0x4, offset = 0x4, fixed_abs, tag = 'smem constant byte address 0x4 - core index']
  #allocation1 [shape = 'u32[144,128]{1,0:T(1,128)}', space=vmem, size = 0x12000, scoped, tag = 'internal scratch']
  %s0 = inlined_call_operand.vmem [shape: f32[16,16], index: 0, kind: input, shape index: {}]
  %s1 = inlined_call_operand.vmem [shape: bf16[128,32], index: 1, kind: input, shape index: {}]
  %s2 = inlined_call_operand.vmem [shape: f32[2,32], index: 2, kind: input, shape index: {}]
  %s3 = inlined_call_operand.vmem [shape: bf16[256,16], index: 3, kind: input, shape index: {}]
  %s4 = inlined_call_operand.vmem [shape: f32[2,16], index: 4, kind: input, shape index: {}]
  %s5 = inlined_call_operand.hbm [shape: f32[16,16], index: 5, kind: output, shape index: {}]
  %s6 = sld [smem:[#allocation0]]
  $region37: #{tpu_custom_call.1} parent=0
    _
  %s8 = ssub.s32 1, %s6
  %s9 = scalar_select 0, %s8, %s6
  $region1: #{tpu_custom_call.1} parent=0
    #allocation2 [shape = 'u8[8192]{0}', space=vmem, size = 0x2000, scoped, tag = 'output window, operand 0, single buffered']
    #allocation3 [shape = 's32[1]{0}', space=sflag, size = 0x4, scoped, tag = 'scoped memory for tpu_custom_call.1']
    %10 = vsyncpa [#allocation3], 0
    // Predicated region
    $region2: #{tpu_custom_call.1} parent=1 // pred_check
      _
    $region3: #{tpu_custom_call.1} parent=1 // pred_check_branch
      %12 = sbr.rel (0) target = $region5
    $region4: #{tpu_custom_call.1} parent=1 // pred_region
      _
    $region5: #{tpu_custom_call.1} parent=1 // pred_fallthru
      _
    // Predicated region
    $region6: #{tpu_custom_call.1} parent=1 // pred_check
      _
    $region7: #{tpu_custom_call.1} parent=1 // pred_check_branch
      %14 = sbr.rel (0) target = $region9
    $region8: #{tpu_custom_call.1} parent=1 // pred_region
      _
    $region9: #{tpu_custom_call.1} parent=1 // pred_fallthru
      _
    // Predicated region
    $region10: #{tpu_custom_call.1} parent=1 // pred_check
      _
    $region11: #{tpu_custom_call.1} parent=1 // pred_check_branch
      %16 = sbr.rel (0) target = $region13
    $region12: #{tpu_custom_call.1} parent=1 // pred_region
      _
    $region13: #{tpu_custom_call.1} parent=1 // pred_fallthru
      _
    // Predicated region
    $region14: #{tpu_custom_call.1} parent=1 // pred_check
      _
    $region15: #{tpu_custom_call.1} parent=1 // pred_check_branch
      %18 = sbr.rel (0) target = $region17
    $region16: #{tpu_custom_call.1} parent=1 // pred_region
      _
    $region17: #{tpu_custom_call.1} parent=1 // pred_fallthru
      _
    // Predicated region
    $region18: #{tpu_custom_call.1} parent=1 // pred_check
      _
    $region19: #{tpu_custom_call.1} parent=1 // pred_check_branch
      %20 = sbr.rel (0) target = $region21
    $region20: #{tpu_custom_call.1} parent=1 // pred_region
      _
    $region21: #{tpu_custom_call.1} parent=1 // pred_fallthru
      _
    %v22 = vld [vmem:[%s1] sm:$0xf]
    %v23 = vld [vmem:[%s1 + $0x4] sm:$0xf]
    %v24 = vld [vmem:[%s1 + $0x8] sm:$0xf]
    %v25 = vld [vmem:[%s1 + $0xc] sm:$0xf]
    %v26 = vld [vmem:[%s1 + $0x10] sm:$0xf]
    %v27 = vld [vmem:[%s1 + $0x14] sm:$0xf]
    %v28 = vld [vmem:[%s1 + $0x18] sm:$0xf]
    %v29 = vld [vmem:[%s1 + $0x1c] sm:$0xf]
    %v30 = vld [vmem:[%s1 + $0x20] sm:$0xf]
    %v31 = vld [vmem:[%s1 + $0x24] sm:$0xf]
    %v32 = vld [vmem:[%s1 + $0x28] sm:$0xf]
    %v33 = vld [vmem:[%s1 + $0x2c] sm:$0xf]
    %v34 = vld [vmem:[%s1 + $0x30] sm:$0xf]
    %v35 = vld [vmem:[%s1 + $0x34] sm:$0xf]
    %v36 = vld [vmem:[%s1 + $0x38] sm:$0xf]
    %v37 = vld [vmem:[%s1 + $0x3c] sm:$0xf]
    %v38 = vld [vmem:[%s3] sm:$0xf]
    %v39 = vld [vmem:[%s3 + $0x4] sm:$0xf]
    %v40 = vld [vmem:[%s3 + $0x8] sm:$0xf]
    %v41 = vld [vmem:[%s3 + $0xc] sm:$0xf]
    %v42 = vld [vmem:[%s3 + $0x10] sm:$0xf]
    %v43 = vld [vmem:[%s3 + $0x14] sm:$0xf]
    %v44 = vld [vmem:[%s3 + $0x18] sm:$0xf]
    %v45 = vld [vmem:[%s3 + $0x1c] sm:$0xf]
    %v46 = vld [vmem:[%s3 + $0x20] sm:$0xf]
    %v47 = vld [vmem:[%s3 + $0x24] sm:$0xf]
    %v48 = vld [vmem:[%s3 + $0x28] sm:$0xf]
    %v49 = vld [vmem:[%s3 + $0x2c] sm:$0xf]
    %v50 = vld [vmem:[%s3 + $0x30] sm:$0xf]
    %v51 = vld [vmem:[%s3 + $0x34] sm:$0xf]
    %v52 = vld [vmem:[%s3 + $0x38] sm:$0xf]
    %v53 = vld [vmem:[%s3 + $0x3c] sm:$0xf]
    %v54 = vld [vmem:[%s3 + $0x40] sm:$0xf]
    %v55 = vld [vmem:[%s3 + $0x44] sm:$0xf]
    %v56 = vld [vmem:[%s3 + $0x48] sm:$0xf]
    %v57 = vld [vmem:[%s3 + $0x4c] sm:$0xf]
    %v58 = vld [vmem:[%s3 + $0x50] sm:$0xf]
    %v59 = vld [vmem:[%s3 + $0x54] sm:$0xf]
    %v60 = vld [vmem:[%s3 + $0x58] sm:$0xf]
    %v61 = vld [vmem:[%s3 + $0x5c] sm:$0xf]
    %v62 = vld [vmem:[%s3 + $0x60] sm:$0xf]
    %v63 = vld [vmem:[%s3 + $0x64] sm:$0xf]
    %v64 = vld [vmem:[%s3 + $0x68] sm:$0xf]
    %v65 = vld [vmem:[%s3 + $0x6c] sm:$0xf]
    %v66 = vld [vmem:[%s3 + $0x70] sm:$0xf]
    %v67 = vld [vmem:[%s3 + $0x74] sm:$0xf]
    %v68 = vld [vmem:[%s3 + $0x78] sm:$0xf]
    %v69 = vld [vmem:[%s3 + $0x7c] sm:$0xf]
    %v70 = vld [vmem:[%s2] sm:$0x1]
    %v71 = vld [vmem:[%s2 + $0x1] sm:$0x1]
    %v72 = vld [vmem:[%s4] sm:$0x1]
    %v73 = vld [vmem:[%s4 + $0x1] sm:$0x1]
    loop: start=0, step=1, limit=2
    $region22: #{tpu_custom_call.1} parent=1 // loop_pre_header
      _
    $region23: #{tpu_custom_call.1} parent=1 // loop_header
      %s75 = sphi 0, %s79
      %p76 = scmp.ge.s32.totalorder %s75, 2
    $region24: #{tpu_custom_call.1} parent=1 // loop_header_branch
      %78 = sbr.rel (%p76) target = $region28
    $region25: #{tpu_custom_call.1} parent=1 // loop_body
      %s80 = smul.u32 %s75, 8
      %s81 = scalar_lea.vmem %s0, %s80
      %v82 = vld [vmem:[%s81] sm:$0xff]
      %v83 = vxor.u32 %v82, 2147483648
      %v84 = vmul.f32 %v83, 1.442695
      %v85 = vpow.pop %v84
      %v86 = vadd.f32 %v85, 1.0
      %v87 = vrcp.pop %v86
      %v88 = vmul.f32 1.0, %v87
      %v89 = vmul.f32 %v82, %v88
      %v90 = vsub.f32 %v82, -3.0
      %v91 = vsub.f32 %v82, -2.3333333
      %v92 = vsub.f32 %v82, -1.6666666
      %v93 = vsub.f32 %v82, -1.0
      %v94 = vsub.f32 %v82, -0.33333334
      %v95 = vsub.f32 %v82, 0.33333334
      %v96 = vsub.f32 %v82, 1.0
      %v97 = vsub.f32 %v82, 1.6666666
      %v98 = vsub.f32 %v82, 2.3333333
      %v99 = vsub.f32 %v82, 3.0
      %vm100 = vcmp.ge.f32.partialorder %v90, 0.0
      %vm101 = vcmp.ge.f32.partialorder %v91, 0.0
      %vm102 = vcmp.ge.f32.partialorder %v92, 0.0
      %vm103 = vcmp.ge.f32.partialorder %v93, 0.0
      %vm104 = vcmp.ge.f32.partialorder %v94, 0.0
      %vm105 = vcmp.ge.f32.partialorder %v95, 0.0
      %vm106 = vcmp.ge.f32.partialorder %v96, 0.0
      %vm107 = vcmp.ge.f32.partialorder %v97, 0.0
      %vm108 = vcmp.ge.f32.partialorder %v98, 0.0
      %vm109 = vcmp.ge.f32.partialorder %v99, 0.0
      %vm110 = vmxor %vm101, 1
      %vm111 = vmand %vm100, %vm110
      %v112 = vsel %vm111, 1, 0
      %v113 = vcvt.s32.f32 %v112
      %vm114 = vmxor %vm102, 1
      %vm115 = vmand %vm101, %vm114
      %v116 = vsel %vm115, 1, 0
      %v117 = vcvt.s32.f32 %v116
      %vm118 = vmxor %vm103, 1
      %vm119 = vmand %vm102, %vm118
      %v120 = vsel %vm119, 1, 0
      %v121 = vcvt.s32.f32 %v120
      %vm122 = vmxor %vm104, 1
      %vm123 = vmand %vm103, %vm122
      %v124 = vsel %vm123, 1, 0
      %v125 = vcvt.s32.f32 %v124
      %vm126 = vmxor %vm105, 1
      %vm127 = vmand %vm104, %vm126
      %v128 = vsel %vm127, 1, 0
      %v129 = vcvt.s32.f32 %v128
      %vm130 = vmxor %vm106, 1
      %vm131 = vmand %vm105, %vm130
      %v132 = vsel %vm131, 1, 0
      %v133 = vcvt.s32.f32 %v132
      %vm134 = vmxor %vm107, 1
      %vm135 = vmand %vm106, %vm134
      %v136 = vsel %vm135, 1, 0
      %v137 = vcvt.s32.f32 %v136
      %vm138 = vmxor %vm108, 1
      %vm139 = vmand %vm107, %vm138
      %v140 = vsel %vm139, 1, 0
      %v141 = vcvt.s32.f32 %v140
      %vm142 = vmxor %vm109, 1
      %vm143 = vmand %vm108, %vm142
      %v144 = vsel %vm143, 1, 0
      %v145 = vcvt.s32.f32 %v144
      %v146 = vmul.f32 %v90, %v113
      %v147 = vmul.f32 %v92, %v117
      %v148 = vsub.f32 %v146, %v147
      %v149 = vmul.f32 %v148, 1.5
      %v150 = vmul.f32 %v91, %v117
      %v151 = vmul.f32 %v93, %v121
      %v152 = vsub.f32 %v150, %v151
      %v153 = vmul.f32 %v152, 1.5
      %v154 = vmul.f32 %v92, %v121
      %v155 = vmul.f32 %v94, %v125
      %v156 = vsub.f32 %v154, %v155
      %v157 = vmul.f32 %v156, 1.5
      %v158 = vmul.f32 %v93, %v125
      %v159 = vmul.f32 %v95, %v129
      %v160 = vsub.f32 %v158, %v159
      %v161 = vmul.f32 %v160, 1.5
      %v162 = vmul.f32 %v94, %v129
      %v163 = vmul.f32 %v96, %v133
      %v164 = vsub.f32 %v162, %v163
      %v165 = vmul.f32 %v164, 1.5
      %v166 = vmul.f32 %v95, %v133
      %v167 = vmul.f32 %v97, %v137
      %v168 = vsub.f32 %v166, %v167
      %v169 = vmul.f32 %v168, 1.5
      %v170 = vmul.f32 %v96, %v137
      %v171 = vmul.f32 %v98, %v141
      %v172 = vsub.f32 %v170, %v171
      %v173 = vmul.f32 %v172, 1.5
      %v174 = vmul.f32 %v97, %v141
      %v175 = vmul.f32 %v99, %v145
      %v176 = vsub.f32 %v174, %v175
      %v177 = vmul.f32 %v176, 1.5
      %v178 = vmul.f32 %v90, %v149
      %v179 = vmul.f32 %v93, %v153
      %v180 = vsub.f32 %v178, %v179
      %v181 = vmul.f32 %v180, 0.75
      %v182 = vmul.f32 %v91, %v153
      %v183 = vmul.f32 %v94, %v157
      %v184 = vsub.f32 %v182, %v183
      %v185 = vmul.f32 %v184, 0.75
      %v186 = vmul.f32 %v92, %v157
      %v187 = vmul.f32 %v95, %v161
      %v188 = vsub.f32 %v186, %v187
      %v189 = vmul.f32 %v188, 0.75
      %v190 = vmul.f32 %v93, %v161
      %v191 = vmul.f32 %v96, %v165
      %v192 = vsub.f32 %v190, %v191
      %v193 = vmul.f32 %v192, 0.75
      %v194 = vmul.f32 %v94, %v165
      %v195 = vmul.f32 %v97, %v169
      %v196 = vsub.f32 %v194, %v195
      %v197 = vmul.f32 %v196, 0.75
      %v198 = vmul.f32 %v95, %v169
      %v199 = vmul.f32 %v98, %v173
      %v200 = vsub.f32 %v198, %v199
      %v201 = vmul.f32 %v200, 0.75
      %v202 = vmul.f32 %v96, %v173
      %v203 = vmul.f32 %v99, %v177
      %v204 = vsub.f32 %v202, %v203
      %v205 = vmul.f32 %v204, 0.75
      %v206 = vmul.f32 %v90, %v181
      %v207 = vmul.f32 %v94, %v185
      %v208 = vsub.f32 %v206, %v207
      %v209 = vmul.f32 %v208, 0.5
      %v210 = vmul.f32 %v91, %v185
      %v211 = vmul.f32 %v95, %v189
      %v212 = vsub.f32 %v210, %v211
      %v213 = vmul.f32 %v212, 0.5
      %v214 = vmul.f32 %v92, %v189
      %v215 = vmul.f32 %v96, %v193
      %v216 = vsub.f32 %v214, %v215
      %v217 = vmul.f32 %v216, 0.5
      %v218 = vmul.f32 %v93, %v193
      %v219 = vmul.f32 %v97, %v197
      %v220 = vsub.f32 %v218, %v219
      %v221 = vmul.f32 %v220, 0.5
      %v222 = vmul.f32 %v94, %v197
      %v223 = vmul.f32 %v98, %v201
      %v224 = vsub.f32 %v222, %v223
      %v225 = vmul.f32 %v224, 0.5
      %v226 = vmul.f32 %v95, %v201
      %v227 = vmul.f32 %v99, %v205
      %v228 = vsub.f32 %v226, %v227
      %v229 = vmul.f32 %v228, 0.5
      %231 = vrot.lane.b32.xlu0 %v209, 16
      %v232 = vpop.permute.xlu0 %231
      %235 = vrot.lane.b32.xlu0 %v213, 32
      %v236 = vpop.permute.xlu0 %235
      %239 = vrot.lane.b32.xlu0 %v217, 48
      %v240 = vpop.permute.xlu0 %239
      %243 = vrot.lane.b32.xlu0 %v221, 64
      %v244 = vpop.permute.xlu0 %243
      %247 = vrot.lane.b32.xlu0 %v225, 80
      %v248 = vpop.permute.xlu0 %247
      %251 = vrot.lane.b32.xlu0 %v229, 96
      %v252 = vpop.permute.xlu0 %251
      %vm254 = vcmask 130048
      %v255 = vsel %vm254, %v89, %v232
      %vm256 = vcmask 261120
      %v257 = vsel %vm256, %v255, %v236
      %vm258 = vcmask 392192
      %v259 = vsel %vm258, %v257, %v240
      %vm260 = vcmask 523264
      %v261 = vsel %vm260, %v259, %v244
      %vm262 = vcmask 654336
      %v263 = vsel %vm262, %v261, %v248
      %vm264 = vcmask 785408
      %v265 = vsel %vm264, %v263, %v252
      %vm266 = vcmask 916480
      %v267 = vsel %vm266, %v265, 0.0
      %v268 = vpack.c.bf16 %v267, %v267
      %v285 = vunpack.c.l.b16 %v22
      %v286 = vunpack.c.l.b16 %v23
      %v287 = vunpack.c.l.b16 %v24
      %v288 = vunpack.c.l.b16 %v25
      %v289 = vunpack.c.l.b16 %v26
      %v290 = vunpack.c.l.b16 %v27
      %v291 = vunpack.c.l.b16 %v28
      %v292 = vunpack.c.l.b16 %v29
      %v293 = vunpack.c.l.b16 %v30
      %v294 = vunpack.c.l.b16 %v31
      %v295 = vunpack.c.l.b16 %v32
      %v296 = vunpack.c.l.b16 %v33
      %v297 = vunpack.c.l.b16 %v34
      %v298 = vunpack.c.l.b16 %v35
      %v299 = vunpack.c.l.b16 %v36
      %v300 = vunpack.c.l.b16 %v37
      %v301 = vpack.c.b16 %v286, %v285
      %v302 = vpack.c.b16 %v288, %v287
      %v303 = vpack.c.b16 %v290, %v289
      %v304 = vpack.c.b16 %v292, %v291
      %v305 = vpack.c.b16 %v294, %v293
      %v306 = vpack.c.b16 %v296, %v295
      %v307 = vpack.c.b16 %v298, %v297
      %v308 = vpack.c.b16 %v300, %v299
      %317 = vmatprep.subr.bf16.mxu0 0
      %318 = vmatpush1.bf16.msra.mxu0 %v308
      %319 = vmatprep.subr.bf16.mxu0 0
      %320 = vmatpush1.bf16.msra.mxu0 %v307
      %321 = vmatprep.subr.bf16.mxu0 0
      %322 = vmatpush1.bf16.msra.mxu0 %v306
      %323 = vmatprep.subr.bf16.mxu0 0
      %324 = vmatpush1.bf16.msra.mxu0 %v305
      %325 = vmatprep.subr.bf16.mxu0 0
      %326 = vmatpush1.bf16.msra.mxu0 %v304
      %327 = vmatprep.subr.bf16.mxu0 0
      %328 = vmatpush1.bf16.msra.mxu0 %v303
      %329 = vmatprep.subr.bf16.mxu0 0
      %330 = vmatpush1.bf16.msra.mxu0 %v302
      %331 = vmatprep.subr.bf16.mxu0 0
      %332 = vmatpush1.bf16.msra.mxu0 %v301
      %333 = vmatprep.subr.bf16.mxu0 0
      %334 = vmatpush2.bf16.msra.mxu0 0
      %335 = vmatprep.subr.bf16.mxu0 0
      %336 = vmatpush2.bf16.msra.mxu0 0
      %337 = vmatprep.subr.bf16.mxu0 0
      %338 = vmatpush2.bf16.msra.mxu0 0
      %339 = vmatprep.subr.bf16.mxu0 0
      %340 = vmatpush2.bf16.msra.mxu0 0
      %341 = vmatprep.subr.bf16.mxu0 0
      %342 = vmatpush2.bf16.msra.mxu0 0
      %343 = vmatprep.subr.bf16.mxu0 0
      %344 = vmatpush2.bf16.msra.mxu0 0
      %345 = vmatprep.subr.bf16.mxu0 0
      %346 = vmatpush2.bf16.msra.mxu0 0
      %347 = vmatprep.subr.bf16.mxu0 0
      %348 = vmatpush2.bf16.msra.mxu0 0
      %349 = vmatprep.mubr.bf16.mxu0 0
      %350 = vmatmul.mubr.bf16.gmra.mxu0 %v268
      %v351 = vpop.f32.mrf.mxu0
      %v352 = vadd.f32 0.0, %v351
      %v353 = vpop.f32.mrf.mxu0
      %v354 = vpop.f32.mrf.mxu0
      %v355 = vpop.f32.mrf.mxu0
      %356 = vdwg.mxu0
      %v357 = vlaneseq
      %v358 = vshrl.u32 %v357, 7
      %v359 = vsub.s32 0, %v358
      %v360 = vrot.slane %v70, %v359
      %v361 = vmul.f32 %v352, %v360
      %v362 = vlaneseq
      %v363 = vshrl.u32 %v362, 7
      %v364 = vsub.s32 0, %v363
      %v365 = vrot.slane %v71, %v364
      %v366 = vadd.f32 %v361, %v365
      %v367 = vmul.f32 %v366, 0.5
      %v368 = vmul.f32 %v366, 0.044715
      %v369 = vmul.f32 %v368, %v366
      %v370 = vmul.f32 %v369, %v366
      %v371 = vadd.f32 %v366, %v370
      %v372 = vmul.f32 %v371, 0.7978846
      %v373 = vtanh.pop %v372
      %v374 = vadd.f32 %v373, 1.0
      %v375 = vmul.f32 %v367, %v374
      %v376 = vxor.u32 %v375, 2147483648
      %v377 = vmul.f32 %v376, 1.442695
      %v378 = vpow.pop %v377
      %v379 = vadd.f32 %v378, 1.0
      %v380 = vrcp.pop %v379
      %v381 = vmul.f32 1.0, %v380
      %v382 = vmul.f32 %v375, %v381
      %v383 = vsub.f32 %v375, -3.0
      %v384 = vsub.f32 %v375, -2.3333333
      %v385 = vsub.f32 %v375, -1.6666666
      %v386 = vsub.f32 %v375, -1.0
      %v387 = vsub.f32 %v375, -0.33333334
      %v388 = vsub.f32 %v375, 0.33333334
      %v389 = vsub.f32 %v375, 1.0
      %v390 = vsub.f32 %v375, 1.6666666
      %v391 = vsub.f32 %v375, 2.3333333
      %v392 = vsub.f32 %v375, 3.0
      %vm393 = vcmp.ge.f32.partialorder %v383, 0.0
      %vm394 = vcmp.ge.f32.partialorder %v384, 0.0
      %vm395 = vcmp.ge.f32.partialorder %v385, 0.0
      %vm396 = vcmp.ge.f32.partialorder %v386, 0.0
      %vm397 = vcmp.ge.f32.partialorder %v387, 0.0
      %vm398 = vcmp.ge.f32.partialorder %v388, 0.0
      %vm399 = vcmp.ge.f32.partialorder %v389, 0.0
      %vm400 = vcmp.ge.f32.partialorder %v390, 0.0
      %vm401 = vcmp.ge.f32.partialorder %v391, 0.0
      %vm402 = vcmp.ge.f32.partialorder %v392, 0.0
      %vm403 = vmxor %vm394, 1
      %vm404 = vmand %vm393, %vm403
      %v405 = vsel %vm404, 1, 0
      %v406 = vcvt.s32.f32 %v405
      %vm407 = vmxor %vm395, 1
      %vm408 = vmand %vm394, %vm407
      %v409 = vsel %vm408, 1, 0
      %v410 = vcvt.s32.f32 %v409
      %vm411 = vmxor %vm396, 1
      %vm412 = vmand %vm395, %vm411
      %v413 = vsel %vm412, 1, 0
      %v414 = vcvt.s32.f32 %v413
      %vm415 = vmxor %vm397, 1
      %vm416 = vmand %vm396, %vm415
      %v417 = vsel %vm416, 1, 0
      %v418 = vcvt.s32.f32 %v417
      %vm419 = vmxor %vm398, 1
      %vm420 = vmand %vm397, %vm419
      %v421 = vsel %vm420, 1, 0
      %v422 = vcvt.s32.f32 %v421
      %vm423 = vmxor %vm399, 1
      %vm424 = vmand %vm398, %vm423
      %v425 = vsel %vm424, 1, 0
      %v426 = vcvt.s32.f32 %v425
      %vm427 = vmxor %vm400, 1
      %vm428 = vmand %vm399, %vm427
      %v429 = vsel %vm428, 1, 0
      %v430 = vcvt.s32.f32 %v429
      %vm431 = vmxor %vm401, 1
      %vm432 = vmand %vm400, %vm431
      %v433 = vsel %vm432, 1, 0
      %v434 = vcvt.s32.f32 %v433
      %vm435 = vmxor %vm402, 1
      %vm436 = vmand %vm401, %vm435
      %v437 = vsel %vm436, 1, 0
      %v438 = vcvt.s32.f32 %v437
      %v439 = vmul.f32 %v383, %v406
      %v440 = vmul.f32 %v385, %v410
      %v441 = vsub.f32 %v439, %v440
      %v442 = vmul.f32 %v441, 1.5
      %v443 = vmul.f32 %v384, %v410
      %v444 = vmul.f32 %v386, %v414
      %v445 = vsub.f32 %v443, %v444
      %v446 = vmul.f32 %v445, 1.5
      %v447 = vmul.f32 %v385, %v414
      %v448 = vmul.f32 %v387, %v418
      %v449 = vsub.f32 %v447, %v448
      %v450 = vmul.f32 %v449, 1.5
      %v451 = vmul.f32 %v386, %v418
      %v452 = vmul.f32 %v388, %v422
      %v453 = vsub.f32 %v451, %v452
      %v454 = vmul.f32 %v453, 1.5
      %v455 = vmul.f32 %v387, %v422
      %v456 = vmul.f32 %v389, %v426
      %v457 = vsub.f32 %v455, %v456
      %v458 = vmul.f32 %v457, 1.5
      %v459 = vmul.f32 %v388, %v426
      %v460 = vmul.f32 %v390, %v430
      %v461 = vsub.f32 %v459, %v460
      %v462 = vmul.f32 %v461, 1.5
      %v463 = vmul.f32 %v389, %v430
      %v464 = vmul.f32 %v391, %v434
      %v465 = vsub.f32 %v463, %v464
      %v466 = vmul.f32 %v465, 1.5
      %v467 = vmul.f32 %v390, %v434
      %v468 = vmul.f32 %v392, %v438
      %v469 = vsub.f32 %v467, %v468
      %v470 = vmul.f32 %v469, 1.5
      %v471 = vmul.f32 %v383, %v442
      %v472 = vmul.f32 %v386, %v446
      %v473 = vsub.f32 %v471, %v472
      %v474 = vmul.f32 %v473, 0.75
      %v475 = vmul.f32 %v384, %v446
      %v476 = vmul.f32 %v387, %v450
      %v477 = vsub.f32 %v475, %v476
      %v478 = vmul.f32 %v477, 0.75
      %v479 = vmul.f32 %v385, %v450
      %v480 = vmul.f32 %v388, %v454
      %v481 = vsub.f32 %v479, %v480
      %v482 = vmul.f32 %v481, 0.75
      %v483 = vmul.f32 %v386, %v454
      %v484 = vmul.f32 %v389, %v458
      %v485 = vsub.f32 %v483, %v484
      %v486 = vmul.f32 %v485, 0.75
      %v487 = vmul.f32 %v387, %v458
      %v488 = vmul.f32 %v390, %v462
      %v489 = vsub.f32 %v487, %v488
      %v490 = vmul.f32 %v489, 0.75
      %v491 = vmul.f32 %v388, %v462
      %v492 = vmul.f32 %v391, %v466
      %v493 = vsub.f32 %v491, %v492
      %v494 = vmul.f32 %v493, 0.75
      %v495 = vmul.f32 %v389, %v466
      %v496 = vmul.f32 %v392, %v470
      %v497 = vsub.f32 %v495, %v496
      %v498 = vmul.f32 %v497, 0.75
      %v499 = vmul.f32 %v383, %v474
      %v500 = vmul.f32 %v387, %v478
      %v501 = vsub.f32 %v499, %v500
      %v502 = vmul.f32 %v501, 0.5
      %v503 = vmul.f32 %v384, %v478
      %v504 = vmul.f32 %v388, %v482
      %v505 = vsub.f32 %v503, %v504
      %v506 = vmul.f32 %v505, 0.5
      %v507 = vmul.f32 %v385, %v482
      %v508 = vmul.f32 %v389, %v486
      %v509 = vsub.f32 %v507, %v508
      %v510 = vmul.f32 %v509, 0.5
      %v511 = vmul.f32 %v386, %v486
      %v512 = vmul.f32 %v390, %v490
      %v513 = vsub.f32 %v511, %v512
      %v514 = vmul.f32 %v513, 0.5
      %v515 = vmul.f32 %v387, %v490
      %v516 = vmul.f32 %v391, %v494
      %v517 = vsub.f32 %v515, %v516
      %v518 = vmul.f32 %v517, 0.5
      %v519 = vmul.f32 %v388, %v494
      %v520 = vmul.f32 %v392, %v498
      %v521 = vsub.f32 %v519, %v520
      %v522 = vmul.f32 %v521, 0.5
      %524 = vrot.lane.b32.xlu0 %v502, 32
      %v525 = vpop.permute.xlu0 %524
      %528 = vrot.lane.b32.xlu0 %v506, 64
      %v529 = vpop.permute.xlu0 %528
      %532 = vrot.lane.b32.xlu0 %v510, 96
      %v533 = vpop.permute.xlu0 %532
      %536 = vrot.lane.b32.xlu0 %v518, 32
      %v537 = vpop.permute.xlu0 %536
      %540 = vrot.lane.b32.xlu0 %v522, 64
      %v541 = vpop.permute.xlu0 %540
      %v543 = vsel %vm256, %v382, %v525
      %v544 = vsel %vm260, %v543, %v529
      %v545 = vsel %vm264, %v544, %v533
      %v546 = vsel %vm256, %v514, %v537
      %v547 = vsel %vm260, %v546, %v541
      %v548 = vsel %vm264, %v547, 0.0
      %v549 = vpack.c.bf16 %v545, %v545
      %v550 = vpack.c.bf16 %v548, %v548
      %v583 = vunpack.c.l.b16 %v38
      %v584 = vunpack.c.l.b16 %v39
      %v585 = vunpack.c.l.b16 %v40
      %v586 = vunpack.c.l.b16 %v41
      %v587 = vunpack.c.l.b16 %v42
      %v588 = vunpack.c.l.b16 %v43
      %v589 = vunpack.c.l.b16 %v44
      %v590 = vunpack.c.l.b16 %v45
      %v591 = vunpack.c.l.b16 %v46
      %v592 = vunpack.c.l.b16 %v47
      %v593 = vunpack.c.l.b16 %v48
      %v594 = vunpack.c.l.b16 %v49
      %v595 = vunpack.c.l.b16 %v50
      %v596 = vunpack.c.l.b16 %v51
      %v597 = vunpack.c.l.b16 %v52
      %v598 = vunpack.c.l.b16 %v53
      %v599 = vunpack.c.l.b16 %v54
      %v600 = vunpack.c.l.b16 %v55
      %v601 = vunpack.c.l.b16 %v56
      %v602 = vunpack.c.l.b16 %v57
      %v603 = vunpack.c.l.b16 %v58
      %v604 = vunpack.c.l.b16 %v59
      %v605 = vunpack.c.l.b16 %v60
      %v606 = vunpack.c.l.b16 %v61
      %v607 = vunpack.c.l.b16 %v62
      %v608 = vunpack.c.l.b16 %v63
      %v609 = vunpack.c.l.b16 %v64
      %v610 = vunpack.c.l.b16 %v65
      %v611 = vunpack.c.l.b16 %v66
      %v612 = vunpack.c.l.b16 %v67
      %v613 = vunpack.c.l.b16 %v68
      %v614 = vunpack.c.l.b16 %v69
      %v615 = vpack.c.b16 %v584, %v583
      %v616 = vpack.c.b16 %v586, %v585
      %v617 = vpack.c.b16 %v588, %v587
      %v618 = vpack.c.b16 %v590, %v589
      %v619 = vpack.c.b16 %v592, %v591
      %v620 = vpack.c.b16 %v594, %v593
      %v621 = vpack.c.b16 %v596, %v595
      %v622 = vpack.c.b16 %v598, %v597
      %v623 = vpack.c.b16 %v600, %v599
      %v624 = vpack.c.b16 %v602, %v601
      %v625 = vpack.c.b16 %v604, %v603
      %v626 = vpack.c.b16 %v606, %v605
      %v627 = vpack.c.b16 %v608, %v607
      %v628 = vpack.c.b16 %v610, %v609
      %v629 = vpack.c.b16 %v612, %v611
      %v630 = vpack.c.b16 %v614, %v613
      %647 = vmatprep.subr.bf16.mxu0 0
      %648 = vmatpush1.bf16.msra.mxu0 %v622
      %649 = vmatprep.subr.bf16.mxu0 0
      %650 = vmatpush1.bf16.msra.mxu0 %v621
      %651 = vmatprep.subr.bf16.mxu0 0
      %652 = vmatpush1.bf16.msra.mxu0 %v620
      %653 = vmatprep.subr.bf16.mxu0 0
      %654 = vmatpush1.bf16.msra.mxu0 %v619
      %655 = vmatprep.subr.bf16.mxu0 0
      %656 = vmatpush1.bf16.msra.mxu0 %v618
      %657 = vmatprep.subr.bf16.mxu0 0
      %658 = vmatpush1.bf16.msra.mxu0 %v617
      %659 = vmatprep.subr.bf16.mxu0 0
      %660 = vmatpush1.bf16.msra.mxu0 %v616
      %661 = vmatprep.subr.bf16.mxu0 0
      %662 = vmatpush1.bf16.msra.mxu0 %v615
      %663 = vmatprep.subr.bf16.mxu0 0
      %664 = vmatpush2.bf16.msra.mxu0 %v630
      %665 = vmatprep.subr.bf16.mxu0 0
      %666 = vmatpush2.bf16.msra.mxu0 %v629
      %667 = vmatprep.subr.bf16.mxu0 0
      %668 = vmatpush2.bf16.msra.mxu0 %v628
      %669 = vmatprep.subr.bf16.mxu0 0
      %670 = vmatpush2.bf16.msra.mxu0 %v627
      %671 = vmatprep.subr.bf16.mxu0 0
      %672 = vmatpush2.bf16.msra.mxu0 %v626
      %673 = vmatprep.subr.bf16.mxu0 0
      %674 = vmatpush2.bf16.msra.mxu0 %v625
      %675 = vmatprep.subr.bf16.mxu0 0
      %676 = vmatpush2.bf16.msra.mxu0 %v624
      %677 = vmatprep.subr.bf16.mxu0 0
      %678 = vmatpush2.bf16.msra.mxu0 %v623
      %679 = vmatprep.mubr.bf16.mxu0 %v550
      %680 = vmatmul.mubr.bf16.gmra.mxu0 %v549
      %v681 = vpop.f32.mrf.mxu0
      %v682 = vadd.f32 0.0, %v681
      %v683 = vpop.f32.mrf.mxu0
      %v684 = vpop.f32.mrf.mxu0
      %v685 = vpop.f32.mrf.mxu0
      %686 = vdwg.mxu0
      %v687 = vlaneseq
      %v688 = vshrl.u32 %v687, 7
      %v689 = vsub.s32 0, %v688
      %v690 = vrot.slane %v72, %v689
      %v691 = vmul.f32 %v682, %v690
      %v692 = vlaneseq
      %v693 = vshrl.u32 %v692, 7
      %v694 = vsub.s32 0, %v693
      %v695 = vrot.slane %v73, %v694
      %v696 = vadd.f32 %v691, %v695
      %s697 = scalar_lea.vmem [#allocation2], %s80
      %698 = vst.msk [vmem:[%s697] sm:$0xff] %vm254, %v696
    $region26: #{tpu_custom_call.1} parent=1 // loop_footer
      %s79 = sadd.s32 1, %s75
    $region27: #{tpu_custom_call.1} parent=1 // loop_footer_branch
      %74 = sbr.rel target = $region23
    $region28: #{tpu_custom_call.1} parent=1 // loop_exit
      _
    // Predicated region
    $region29: #{tpu_custom_call.1} parent=1 // pred_check
      _
    $region30: #{tpu_custom_call.1} parent=1 // pred_check_branch
      %700 = sbr.rel (0) target = $region32
    $region31: #{tpu_custom_call.1} parent=1 // pred_region
      %s702 = ssub.s32 256, 256
      %703 = vsyncadd [#allocation3], %s702
      %s704 = sshll.u32 [#allocation2], 4
      %s705 = int_to_ptr.vmem [resolvable:$true] %s704
      %710 = dma.vmem_to_hbm [thread:$0]  %s705, 256, %s5, [#allocation3], 128, 128, 8
    $region32: #{tpu_custom_call.1} parent=1 // pred_fallthru
      _
    // Predicated region
    $region33: #{tpu_custom_call.1} parent=1 // pred_check
      _
    $region34: #{tpu_custom_call.1} parent=1 // pred_check_branch
      %712 = sbr.rel (0) target = $region36
    $region35: #{tpu_custom_call.1} parent=1 // pred_region
      %713 = dma.done [#allocation3], 256
    $region36: #{tpu_custom_call.1} parent=1 // pred_fallthru
      _
    %714 = vsyncpa [#allocation3], 1

</llo_original>
